<compile_context>
chip_gen: v7x
topology: tpu7x:2x2x1
jax: 0.10.0
libtpu: 0.0.40
codegen_flags: <defaults>
</compile_context>

<pallas_src>
import math

import jax
import jax.numpy as jnp
from jax.experimental import pallas as pl
from jax.experimental.pallas import tpu as pltpu


def _attention_kernel(x_ref, w_ref, b_ref, o_ref, denom_ref, acc_ref):
    # x_ref: (tb, ts, F)  w_ref: (1, F)  b_ref: (1, ts, 1)  o_ref: (tb, F)
    # denom_ref: (tb, 1) f32 scratch   acc_ref: (tb, F) f32 scratch
    s_idx = pl.program_id(1)

    @pl.when(s_idx == 0)
    def _():
        denom_ref[...] = jnp.zeros_like(denom_ref)
        acc_ref[...] = jnp.zeros_like(acc_ref)

    w = w_ref[...].astype(jnp.float32)[None, :, :]      # (1, 1, F) lane-dense
    b = b_ref[...].astype(jnp.float32)                  # (1, ts, 1)

    # eij = (x @ weight) over this step tile: contract F on the lane axis via
    # a VPU multiply + lane reduce (fused per-vreg; no stored (tb,ts,F) temp).
    eij = jnp.sum(x_ref[...] * w, axis=-1, keepdims=True)      # (tb, ts, 1) f32
    a = jnp.exp(jnp.tanh(eij + b))                              # in [e^-1, e^1]
    # TODO(synk): optional `mask` argument of the PyTorch forward not implemented
    # (would multiply `a` by the mask block here).

    denom_ref[...] += jnp.sum(a, axis=1)                        # (tb, 1)
    # Weighted sum over this step tile; `a` broadcasts along lanes for free and
    # the reduce is a sublane reduce.  x_ref is re-read (cast via promotion)
    # instead of holding a full f32 upcast of the tile live.
    acc_ref[...] += jnp.sum(x_ref[...] * a, axis=1)             # (tb, F) f32

    @pl.when(s_idx == pl.num_programs(1) - 1)
    def _():
        d = denom_ref[...] + 1e-10
        inv = pl.reciprocal(d, approx=True)      # EUP slot
        inv = inv * (2.0 - d * inv)              # one Newton step -> full f32
        # TODO(synk): for F < 128 this store is lane-masked (vst.msk); a
        # lane-dense padded output slab was judged not worth the extra wrapper
        # copy for this HBM-read-bound kernel.
        o_ref[...] = (acc_ref[...] * inv).astype(o_ref.dtype)


def _vmem_capacity_bytes():
    try:
        return int(pltpu.get_tpu_info().vmem_capacity_bytes)
    except Exception:
        return 64 * 1024 * 1024          # conservative default (v7x per-TC)


def _pick_tiles(B, S, F, itemsize, budget):
    """Pick (batch_tile, step_tile) for the streamed x block (tb, ts, F).

    Constraints:
      * tb is a multiple of 8 unless tb == B  (keeps the output block (tb, F)
        legal under the (8,128) rule and sublane stores unmasked).
      * ts divides S exactly (padded step rows would corrupt the softmax
        denominator) and is a multiple of 8 unless ts == S.
      * tb*ts*F*itemsize <= budget whenever a legal choice exists.
      * batch grid has >= 2 steps when B allows it (v7x megacore).
    """
    min_tb = B if B < 8 else 8

    # --- step-axis tile -----------------------------------------------------
    ts = S
    if min_tb * S * F * itemsize > budget:
        divisors = [d for d in range(8, S, 8) if S % d == 0]
        fitting = [d for d in divisors if min_tb * d * F * itemsize <= budget]
        if fitting:
            ts = max(fitting)
        elif divisors:
            ts = min(divisors)          # still over budget; vmem_limit covers it
        # else: no legal multiple-of-8 divisor -> keep the full step axis.

    # --- batch-axis tile ----------------------------------------------------
    if B <= 8:
        tb = B
    else:
        per_row = ts * F * itemsize
        tb = max(8, min(B, (budget // per_row) // 8 * 8))
        if tb >= B and B >= 16:
            # Guarantee >= 2 (even) grid steps on the parallel axis so both
            # v7x TensorCores get work.
            tb = max(8, (B // 2) // 8 * 8)
    return tb, ts


def attention_forward(x, weight, bias=None, *, batch_tile=None, step_tile=None):
    """x: (B, S, F), weight: (F, 1), bias: (S,) or None -> (B, F)."""
    B, S, F = x.shape
    if bias is None:
        bias = jnp.zeros((S,), x.dtype)

    w_row = weight.reshape(1, F)                # (F,1) param -> lane-dense row
    b3 = bias.reshape(1, S, 1)                  # step axis on sublanes

    itemsize = jnp.dtype(x.dtype).itemsize
    vmem_cap = _vmem_capacity_bytes()
    budget = min(16 * 1024 * 1024, vmem_cap // 8)          # per x buffer
    vmem_limit = min(int(0.75 * vmem_cap), 96 * 1024 * 1024)

    tb, ts = _pick_tiles(B, S, F, itemsize, budget)
    if batch_tile is not None:
        tb = batch_tile
    if step_tile is not None:
        ts = step_tile
    assert S % ts == 0, "step tile must divide step_dim exactly"
    assert tb == B or tb % 8 == 0, "batch tile must be 8-aligned or cover B"

    nb = (B + tb - 1) // tb
    ns = S // ts
    grid = (nb, ns)

    cost = pl.CostEstimate(
        flops=4 * B * S * F,                       # eij + weighted sum (mul+add)
        transcendentals=2 * B * S,                 # tanh + exp per (b, s)
        bytes_accessed=(B * S * F * itemsize       # x read
                        + B * F * itemsize         # output write
                        + F * itemsize + S * itemsize),
    )

    return pl.pallas_call(
        _attention_kernel,
        out_shape=jax.ShapeDtypeStruct((B, F), x.dtype),
        grid=grid,
        in_specs=[
            pl.BlockSpec((tb, ts, F), lambda i, s: (i, s, 0)),   # streamed
            pl.BlockSpec((1, F), lambda i, s: (0, 0)),           # resident
            pl.BlockSpec((1, ts, 1), lambda i, s: (0, s, 0)),    # small
        ],
        out_specs=pl.BlockSpec((tb, F), lambda i, s: (i, 0)),    # resident over s
        scratch_shapes=[
            pltpu.VMEM((tb, 1), jnp.float32),    # softmax denominator
            pltpu.VMEM((tb, F), jnp.float32),    # weighted-sum accumulator
        ],
        compiler_params=pltpu.CompilerParams(
            dimension_semantics=("parallel", "arbitrary"),
            vmem_limit_bytes=vmem_limit,
        ),
        cost_estimate=cost,
    )(x, w_row, b3)


def reference_forward(x, weight, bias):
    B, S, F = x.shape
    eij = jnp.dot(x.reshape(-1, F), weight,
                  precision=jax.lax.Precision.HIGHEST).reshape(B, S)
    eij = jnp.tanh(eij + bias[None, :])
    a = jnp.exp(eij)
    a = a / (jnp.sum(a, axis=1, keepdims=True) + 1e-10)
    return jnp.sum(x * a[:, :, None], axis=1)


if __name__ == "__main__":
    key = jax.random.PRNGKey(0)
    kx, kw, kx2, kw2, kb2, kx3, kw3, kb3 = jax.random.split(key, 8)

    # Deterministic stand-in for nn.init.kaiming_uniform_ on an (F, 1) tensor:
    # fan_in = 1, gain = sqrt(2)  =>  bound = sqrt(6).
    bound = math.sqrt(6.0)

    # --- small shapes consistent with the module: batch=2, step_dim=8, feature_dim=32
    B, S, F = 2, 8, 32
    x = jax.random.normal(kx, (B, S, F), dtype=jnp.float32)
    weight = jax.random.uniform(kw, (F, 1), jnp.float32, -bound, bound)
    bias = jnp.zeros((S,), jnp.float32)          # self.b initialized to zeros

    out = jax.block_until_ready(attention_forward(x, weight, bias))
    ref = reference_forward(x, weight, bias)
    assert out.shape == (B, F)
    assert jnp.allclose(out, ref, atol=1e-5, rtol=1e-5)

    # --- batch-tiled path (grid=(4,1)): exercises pipelining with 8-aligned tiles
    B2, S2, F2 = 256, 8, 128
    x2 = jax.random.normal(kx2, (B2, S2, F2), jnp.float32)
    w2 = jax.random.uniform(kw2, (F2, 1), jnp.float32, -bound, bound)
    b2 = 0.1 * jax.random.normal(kb2, (S2,), jnp.float32)
    out2 = jax.block_until_ready(attention_forward(x2, w2, b2, batch_tile=64))
    assert jnp.allclose(out2, reference_forward(x2, w2, b2), atol=1e-5, rtol=1e-5)

    # --- default heuristic (auto tiles; batch grid >= 2 for megacore)
    out2b = jax.block_until_ready(attention_forward(x2, w2, b2))
    assert jnp.allclose(out2b, reference_forward(x2, w2, b2), atol=1e-5, rtol=1e-5)

    # --- step-tiled accumulator path (grid=(1,4)): exercises the "arbitrary" axis
    B3, S3, F3 = 8, 32, 128
    x3 = jax.random.normal(kx3, (B3, S3, F3), jnp.float32)
    w3 = jax.random.uniform(kw3, (F3, 1), jnp.float32, -bound, bound)
    b3 = 0.05 * jax.random.normal(kb3, (S3,), jnp.float32)
    out3 = jax.block_until_ready(
        attention_forward(x3, w3, b3, batch_tile=8, step_tile=8))
    assert jnp.allclose(out3, reference_forward(x3, w3, b3), atol=1e-5, rtol=1e-5)

    print("KERNEL_OK")
</pallas_src>

<mosaic_0001>
module attributes {stable_mosaic.version = 11 : i64} {
  func.func @_attention_kernel(%arg0: i32, %arg1: i32, %arg2: memref<2x8x32xf32, #tpu.memory_space<vmem>>, %arg3: memref<1x32xf32, #tpu.memory_space<vmem>>, %arg4: memref<1x8x1xf32, #tpu.memory_space<vmem>>, %arg5: memref<2x32xf32, #tpu.memory_space<vmem>>, %arg6: memref<2x1xf32, #tpu.memory_space<vmem>>, %arg7: memref<2x32xf32, #tpu.memory_space<vmem>>) attributes {dimension_semantics = [#tpu.dimension_semantics<parallel>, #tpu.dimension_semantics<arbitrary>], iteration_bounds = array<i64: 1, 1>, scalar_prefetch = 0 : i64, scratch_operands = 2 : i64, tpu.core_type = #tpu.core_type<tc>, window_params = [{transform_indices = @transform_0, window_bounds = array<i64: 2, 8, 32>}, {pipeline_mode = #tpu.pipeline_mode<synchronous>, transform_indices = @transform_1, window_bounds = array<i64: 1, 32>}, {transform_indices = @transform_2, window_bounds = array<i64: 1, 8, 1>}, {transform_indices = @transform_3, window_bounds = array<i64: 2, 32>}]} {
    %c0_i32 = arith.constant 0 : i32
    %0 = arith.cmpi eq, %arg1, %c0_i32 : i32
    %1 = arith.extui %0 : i1 to i32
    %c0_i32_0 = arith.constant 0 : i32
    %2 = arith.cmpi ne, %1, %c0_i32_0 : i32
    scf.if %2 {
      %cst_23 = arith.constant 0.000000e+00 : f32
      %29 = vector.broadcast %cst_23 : f32 to vector<2x1xf32>
      %c0_24 = arith.constant 0 : index
      %c0_25 = arith.constant 0 : index
      %30 = vector.load %arg6[%c0_24, %c0_25] : memref<2x1xf32, #tpu.memory_space<vmem>>, vector<2x1xf32>
      tpu.vector_store %arg6[%c0_24, %c0_25], %29 {strides = array<i32>} : memref<2x1xf32, #tpu.memory_space<vmem>>, vector<2x1xf32>,
      %cst_26 = arith.constant 0.000000e+00 : f32
      %31 = vector.broadcast %cst_26 : f32 to vector<2x32xf32>
      %c0_27 = arith.constant 0 : index
      %c0_28 = arith.constant 0 : index
      %32 = vector.load %arg7[%c0_27, %c0_28] : memref<2x32xf32, #tpu.memory_space<vmem>>, vector<2x32xf32>
      tpu.vector_store %arg7[%c0_27, %c0_28], %31 {strides = array<i32>} : memref<2x32xf32, #tpu.memory_space<vmem>>, vector<2x32xf32>,
    } else {
    }
    %c0 = arith.constant 0 : index
    %c0_1 = arith.constant 0 : index
    %3 = vector.load %arg3[%c0, %c0_1] : memref<1x32xf32, #tpu.memory_space<vmem>>, vector<1x32xf32>
    %4 = vector.shape_cast %3 : vector<1x32xf32> to vector<1x1x32xf32>
    %c0_2 = arith.constant 0 : index
    %c0_3 = arith.constant 0 : index
    %c0_4 = arith.constant 0 : index
    %5 = vector.load %arg4[%c0_2, %c0_3, %c0_4] : memref<1x8x1xf32, #tpu.memory_space<vmem>>, vector<1x8x1xf32>
    %c0_5 = arith.constant 0 : index
    %c0_6 = arith.constant 0 : index
    %c0_7 = arith.constant 0 : index
    %6 = vector.load %arg2[%c0_5, %c0_6, %c0_7] : memref<2x8x32xf32, #tpu.memory_space<vmem>>, vector<2x8x32xf32>
    %7 = vector.broadcast %4 : vector<1x1x32xf32> to vector<2x8x32xf32>
    %8 = arith.mulf %6, %7 : vector<2x8x32xf32>
    %cst = arith.constant dense<0.000000e+00> : vector<2x8xf32>
    %9 = vector.multi_reduction <add>, %8, %cst [2] : vector<2x8x32xf32> to vector<2x8xf32>
    %10 = vector.shape_cast %9 : vector<2x8xf32> to vector<2x8x1xf32>
    %11 = vector.broadcast %5 : vector<1x8x1xf32> to vector<2x8x1xf32>
    %12 = arith.addf %10, %11 : vector<2x8x1xf32>
    %13 = math.tanh %12 : vector<2x8x1xf32>
    %14 = math.exp %13 : vector<2x8x1xf32>
    %c0_8 = arith.constant 0 : index
    %c0_9 = arith.constant 0 : index
    %15 = vector.load %arg6[%c0_8, %c0_9] : memref<2x1xf32, #tpu.memory_space<vmem>>, vector<2x1xf32>
    %cst_10 = arith.constant dense<0.000000e+00> : vector<2x1xf32>
    %16 = vector.multi_reduction <add>, %14, %cst_10 [1] : vector<2x8x1xf32> to vector<2x1xf32>
    %17 = arith.addf %15, %16 : vector<2x1xf32>
    %c0_11 = arith.constant 0 : index
    %c0_12 = arith.constant 0 : index
    %18 = vector.load %arg6[%c0_11, %c0_12] : memref<2x1xf32, #tpu.memory_space<vmem>>, vector<2x1xf32>
    tpu.vector_store %arg6[%c0_11, %c0_12], %17 {strides = array<i32>} : memref<2x1xf32, #tpu.memory_space<vmem>>, vector<2x1xf32>,
    %c0_13 = arith.constant 0 : index
    %c0_14 = arith.constant 0 : index
    %19 = vector.load %arg7[%c0_13, %c0_14] : memref<2x32xf32, #tpu.memory_space<vmem>>, vector<2x32xf32>
    %c0_15 = arith.constant 0 : index
    %c0_16 = arith.constant 0 : index
    %c0_17 = arith.constant 0 : index
    %20 = vector.load %arg2[%c0_15, %c0_16, %c0_17] : memref<2x8x32xf32, #tpu.memory_space<vmem>>, vector<2x8x32xf32>
    %21 = vector.broadcast %14 : vector<2x8x1xf32> to vector<2x8x32xf32>
    %22 = arith.mulf %20, %21 : vector<2x8x32xf32>
    %cst_18 = arith.constant dense<0.000000e+00> : vector<2x32xf32>
    %23 = vector.multi_reduction <add>, %22, %cst_18 [1] : vector<2x8x32xf32> to vector<2x32xf32>
    %24 = arith.addf %19, %23 : vector<2x32xf32>
    %c0_19 = arith.constant 0 : index
    %c0_20 = arith.constant 0 : index
    %25 = vector.load %arg7[%c0_19, %c0_20] : memref<2x32xf32, #tpu.memory_space<vmem>>, vector<2x32xf32>
    tpu.vector_store %arg7[%c0_19, %c0_20], %24 {strides = array<i32>} : memref<2x32xf32, #tpu.memory_space<vmem>>, vector<2x32xf32>,
    %c0_i32_21 = arith.constant 0 : i32
    %26 = arith.cmpi eq, %arg1, %c0_i32_21 : i32
    %27 = arith.extui %26 : i1 to i32
    %c0_i32_22 = arith.constant 0 : i32
    %28 = arith.cmpi ne, %27, %c0_i32_22 : i32
    scf.if %28 {
      %c0_23 = arith.constant 0 : index
      %c0_24 = arith.constant 0 : index
      %29 = vector.load %arg6[%c0_23, %c0_24] : memref<2x1xf32, #tpu.memory_space<vmem>>, vector<2x1xf32>
      %cst_25 = arith.constant 1.000000e-10 : f32
      %30 = vector.broadcast %cst_25 : f32 to vector<2x1xf32>
      %31 = arith.addf %29, %30 : vector<2x1xf32>
      %32 = tpu.reciprocal %31 {approx = true} : vector<2x1xf32> -> vector<2x1xf32>
      %33 = arith.mulf %31, %32 : vector<2x1xf32>
      %cst_26 = arith.constant 2.000000e+00 : f32
      %34 = vector.broadcast %cst_26 : f32 to vector<2x1xf32>
      %35 = arith.subf %34, %33 : vector<2x1xf32>
      %36 = arith.mulf %32, %35 : vector<2x1xf32>
      %c0_27 = arith.constant 0 : index
      %c0_28 = arith.constant 0 : index
      %37 = vector.load %arg7[%c0_27, %c0_28] : memref<2x32xf32, #tpu.memory_space<vmem>>, vector<2x32xf32>
      %38 = vector.broadcast %36 : vector<2x1xf32> to vector<2x32xf32>
      %39 = arith.mulf %37, %38 : vector<2x32xf32>
      %c0_29 = arith.constant 0 : index
      %c0_30 = arith.constant 0 : index
      %40 = vector.load %arg5[%c0_29, %c0_30] : memref<2x32xf32, #tpu.memory_space<vmem>>, vector<2x32xf32>
      tpu.vector_store %arg5[%c0_29, %c0_30], %39 {strides = array<i32>} : memref<2x32xf32, #tpu.memory_space<vmem>>, vector<2x32xf32>,
    } else {
    }
    return
  }
  func.func @transform_0(%arg0: i32, %arg1: i32) -> (i32, i32, i32) {
    %c0_i32 = arith.constant 0 : i32
    %c0_i32_0 = arith.constant 0 : i32
    return %arg0, %arg1, %c0_i32 : i32, i32, i32
  }
  func.func @transform_1(%arg0: i32, %arg1: i32) -> (i32, i32) {
    %c0_i32 = arith.constant 0 : i32
    %c0_i32_0 = arith.constant 0 : i32
    %c0_i32_1 = arith.constant 0 : i32
    return %c0_i32, %c0_i32_0 : i32, i32
  }
  func.func @transform_2(%arg0: i32, %arg1: i32) -> (i32, i32, i32) {
    %c0_i32 = arith.constant 0 : i32
    %c0_i32_0 = arith.constant 0 : i32
    %c0_i32_1 = arith.constant 0 : i32
    return %c0_i32, %arg1, %c0_i32_0 : i32, i32, i32
  }
  func.func @transform_3(%arg0: i32, %arg1: i32) -> (i32, i32) {
    %c0_i32 = arith.constant 0 : i32
    %c0_i32_0 = arith.constant 0 : i32
    return %arg0, %c0_i32 : i32, i32
  }
}

</mosaic_0001>

<llo_original>
// kernel: tpu_custom_call.1
$region0: #{tpu_custom_call.1}
  #allocation0 [shape = 'u32[]', space=smem, size = 0x4, offset = 0x4, fixed_abs, tag = 'smem constant byte address 0x4 - core index']
  #allocation1 [shape = 'u32[144,128]{1,0:T(1,128)}', space=vmem, size = 0x12000, scoped, tag = 'internal scratch']
  #allocation2 [shape = 'f32[2,1]{1,0:T(2,128)}', space=vmem, size = 0x400, scoped, tag = 'scratch operand']
  #allocation3 [shape = 'f32[2,32]{1,0:T(2,128)}', space=vmem, size = 0x400, scoped, tag = 'scratch operand']
  %s0 = inlined_call_operand.hbm [shape: f32[2,8,32], index: 0, kind: input, shape index: {}]
  %s1 = inlined_call_operand.vmem [shape: f32[1,32], index: 1, kind: input, shape index: {}]
  %s2 = inlined_call_operand.vmem [shape: f32[1,8,1], index: 2, kind: input, shape index: {}]
  %s3 = inlined_call_operand.hbm [shape: f32[2,32], index: 3, kind: output, shape index: {}]
  %s4 = sld [smem:[#allocation0]]
  $region34: #{tpu_custom_call.1} parent=0
    _
  %s6 = ssub.s32 1, %s4
  %s7 = scalar_select 0, %s6, %s4
  $region1: #{tpu_custom_call.1} parent=0
    #allocation4 [shape = 'u8[8192]{0}', space=vmem, size = 0x2000, scoped, tag = 'input window, operand 0, single buffered']
    #allocation5 [shape = 's32[1]{0}', space=sflag, size = 0x4, scoped, tag = 'scoped memory for tpu_custom_call.1']
    #allocation6 [shape = 's32[1]{0}', space=sflag, size = 0x4, scoped, tag = 'scoped memory for tpu_custom_call.1']
    #allocation7 [shape = 'u8[1024]{0}', space=vmem, size = 0x400, scoped, tag = 'output window, operand 0, single buffered']
    %8 = vsyncpa [#allocation5], 0
    %9 = vsyncpa [#allocation6], 0
    // Predicated region
    $region2: #{tpu_custom_call.1} parent=1 // pred_check
      _
    $region3: #{tpu_custom_call.1} parent=1 // pred_check_branch
      %11 = sbr.rel (0) target = $region5
    $region4: #{tpu_custom_call.1} parent=1 // pred_region
      %s13 = ssub.s32 256, 256
      %14 = vsyncadd [#allocation5], %s13
      %s15 = sshll.u32 [#allocation4], 4
      %s16 = int_to_ptr.vmem [resolvable:$true] %s15
      %21 = dma.hbm_to_vmem [thread:$0]  %s0, 256, %s16, [#allocation5], 128, 128, 8
    $region5: #{tpu_custom_call.1} parent=1 // pred_fallthru
      _
    // Predicated region
    $region6: #{tpu_custom_call.1} parent=1 // pred_check
      _
    $region7: #{tpu_custom_call.1} parent=1 // pred_check_branch
      %23 = sbr.rel (0) target = $region9
    $region8: #{tpu_custom_call.1} parent=1 // pred_region
      _
    $region9: #{tpu_custom_call.1} parent=1 // pred_fallthru
      _
    // Predicated region
    $region10: #{tpu_custom_call.1} parent=1 // pred_check
      _
    $region11: #{tpu_custom_call.1} parent=1 // pred_check_branch
      %25 = sbr.rel (0) target = $region13
    $region12: #{tpu_custom_call.1} parent=1 // pred_region
      _
    $region13: #{tpu_custom_call.1} parent=1 // pred_fallthru
      _
    // Predicated region
    $region14: #{tpu_custom_call.1} parent=1 // pred_check
      _
    $region15: #{tpu_custom_call.1} parent=1 // pred_check_branch
      %27 = sbr.rel (0) target = $region17
    $region16: #{tpu_custom_call.1} parent=1 // pred_region
      %28 = dma.done [#allocation5], 256
    $region17: #{tpu_custom_call.1} parent=1 // pred_fallthru
      _
    %p29 = scmp.eq.s32.totalorder 0, 0
    // Predicated region
    $region18: #{tpu_custom_call.1} parent=1 // pred_check
      %p30 = pneg %p29
    $region19: #{tpu_custom_call.1} parent=1 // pred_check_branch
      %32 = sbr.rel (%p30) target = $region21
    $region20: #{tpu_custom_call.1} parent=1 // pred_region
      %vm33 = vcmask 1024
      %34 = vst.msk [vmem:[#allocation2] sm:$0x3] %vm33, 0.0
      %vm35 = vcmask 254976
      %36 = vst.msk [vmem:[#allocation3] sm:$0x3] %vm35, 0.0
    $region21: #{tpu_custom_call.1} parent=1 // pred_fallthru
      _
    %v37 = vld [vmem:[%s1] sm:$0x1]
    %v38 = vld [vmem:[%s2] sm:$0xff]
    %v39 = vld [vmem:[#allocation4] sm:$0xff]
    %v40 = vld [vmem:[#allocation4 + $0x8] sm:$0xff]
    %v42 = vlaneseq
    %v43 = vshrl.u32 %v42, 7
    %v44 = vsub.s32 0, %v43
    %v45 = vrot.slane %v37, %v44
    %v47 = vmul.f32 %v39, %v45
    %v48 = vmul.f32 %v40, %v45
    %vm49 = vcmask 261120
    %v50 = vsel %vm49, %v47, 0.0
    %51 = vadd.xlane.f32.xlu0 %v50
    %v52 = vpop.xlane.xlu0 %51
    %v53 = vsel %vm49, %v48, 0.0
    %54 = vadd.xlane.f32.xlu0 %v53
    %v55 = vpop.xlane.xlu0 %54
    %v56 = vadd.f32 %v52, %v38
    %v57 = vadd.f32 %v55, %v38
    %v58 = vtanh.pop %v56
    %v59 = vtanh.pop %v57
    %v60 = vmul.f32 %v58, 1.442695
    %v61 = vpow.pop %v60
    %v62 = vmul.f32 %v59, 1.442695
    %v63 = vpow.pop %v62
    %v64 = vld [vmem:[#allocation2] sm:$0x3]
    %vm65 = vcmask 7168
    %v66 = vsel %vm65, %v61, 0.0
    %v67 = vrot.slane %v66, 4
    %v68 = vadd.f32 %v66, %v67
    %v69 = vrot.slane %v68, 2
    %v70 = vadd.f32 %v68, %v69
    %v71 = vrot.slane %v70, 1
    %v72 = vadd.f32 %v70, %v71
    %v73 = vsel %vm65, %v63, 0.0
    %v74 = vrot.slane %v73, 4
    %v75 = vadd.f32 %v73, %v74
    %v76 = vrot.slane %v75, 2
    %v77 = vadd.f32 %v75, %v76
    %v78 = vrot.slane %v77, 1
    %v79 = vadd.f32 %v77, %v78
    %vm82 = vcmask 1041409
    %v83 = vsel %vm82, %v79, %v72
    %v85 = vadd.f32 %v64, %v83
    %vm86 = vcmask 1024
    %87 = vst.msk [vmem:[#allocation2] sm:$0x3] %vm86, %v85
    %v88 = vld [vmem:[#allocation3] sm:$0x3]
    %v89 = vld [vmem:[#allocation4] sm:$0xff]
    %v90 = vld [vmem:[#allocation4 + $0x8] sm:$0xff]
    %92 = vset.pattern.permute.xlu0 0
    %93 = vperm.xlu0 %92, %v61
    %v94 = vpop.permute.xlu0 %93
    %97 = vset.pattern.permute.xlu0 0
    %98 = vperm.xlu0 %97, %v63
    %v99 = vpop.permute.xlu0 %98
    %v101 = vmul.f32 %v89, %v94
    %v102 = vmul.f32 %v90, %v99
    %v103 = vsel %vm49, %v101, 0.0
    %v104 = vrot.slane %v103, 4
    %v105 = vadd.f32 %v103, %v104
    %v106 = vrot.slane %v105, 2
    %v107 = vadd.f32 %v105, %v106
    %v108 = vrot.slane %v107, 1
    %v109 = vadd.f32 %v107, %v108
    %v110 = vsel %vm49, %v102, 0.0
    %v111 = vrot.slane %v110, 4
    %v112 = vadd.f32 %v110, %v111
    %v113 = vrot.slane %v112, 2
    %v114 = vadd.f32 %v112, %v113
    %v115 = vrot.slane %v114, 1
    %v116 = vadd.f32 %v114, %v115
    %v119 = vsel %vm82, %v116, %v109
    %v121 = vadd.f32 %v88, %v119
    %vm122 = vcmask 254976
    %123 = vst.msk [vmem:[#allocation3] sm:$0x3] %vm122, %v121
    // Predicated region
    $region22: #{tpu_custom_call.1} parent=1 // pred_check
      %p124 = pneg %p29
    $region23: #{tpu_custom_call.1} parent=1 // pred_check_branch
      %126 = sbr.rel (%p124) target = $region25
    $region24: #{tpu_custom_call.1} parent=1 // pred_region
      %v127 = vld [vmem:[#allocation2] sm:$0x3]
      %v128 = vadd.f32 %v127, 1e-10
      %v129 = vrcp.pop %v128
      %v130 = vmul.f32 %v128, %v129
      %v131 = vsub.f32 2.0, %v130
      %v132 = vmul.f32 %v129, %v131
      %v133 = vld [vmem:[#allocation3] sm:$0x3]
      %135 = vset.pattern.permute.xlu0 0
      %136 = vperm.xlu0 %135, %v132
      %v137 = vpop.permute.xlu0 %136
      %v139 = vmul.f32 %v133, %v137
      %140 = vst.msk [vmem:[#allocation7] sm:$0x3] %vm122, %v139
    $region25: #{tpu_custom_call.1} parent=1 // pred_fallthru
      _
    // Predicated region
    $region26: #{tpu_custom_call.1} parent=1 // pred_check
      _
    $region27: #{tpu_custom_call.1} parent=1 // pred_check_branch
      %142 = sbr.rel (0) target = $region29
    $region28: #{tpu_custom_call.1} parent=1 // pred_region
      %s144 = ssub.s32 32, 32
      %145 = vsyncadd [#allocation6], %s144
      %s147 = sshll.u32 [#allocation7], 4
      %s148 = int_to_ptr.vmem [resolvable:$true] %s147
      %150 = dma.vmem_to_hbm [thread:$0]  %s148, 32, %s3, [#allocation6]
    $region29: #{tpu_custom_call.1} parent=1 // pred_fallthru
      _
    // Predicated region
    $region30: #{tpu_custom_call.1} parent=1 // pred_check
      _
    $region31: #{tpu_custom_call.1} parent=1 // pred_check_branch
      %152 = sbr.rel (0) target = $region33
    $region32: #{tpu_custom_call.1} parent=1 // pred_region
      %153 = dma.done [#allocation6], 32
    $region33: #{tpu_custom_call.1} parent=1 // pred_fallthru
      _
    %154 = vsyncpa [#allocation5], 1
    %155 = vsyncpa [#allocation6], 1

</llo_original>
